<compile_context>
chip_gen: v5e
topology: v5e:2x2
jax: 0.10.0
libtpu: 0.0.40
codegen_flags: <defaults>
</compile_context>

<pallas_src>
import jax
import jax.numpy as jnp
from jax.experimental import pallas as pl
from jax.experimental.pallas import tpu as pltpu


def _par_head_kernel(x_ref, w1_ref, b1_ref, w2_ref, b2_ref, o_ref):
    # x_ref : (tm, D)   streamed VMEM tile of features (f32 or bf16)
    # w1_ref: (D, H)    first linear weight  (resident, single VMEM copy)
    # b1_ref: (1, H)    first linear bias    (f32)
    # w2_ref: (H, P)    second linear weight (f32 or bf16)
    # b2_ref: (1, P)    second linear bias   (f32)
    # o_ref : (tm, P)   streamed output tile (unpadded lane dim)
    h = jnp.dot(x_ref[...], w1_ref[...], preferred_element_type=jnp.float32)
    h = jnp.maximum(h + b1_ref[...], 0.0)          # bias + ReLU (f32)
    h = h.astype(w2_ref.dtype)                     # bf16 second matmul in perf mode
    out = jnp.dot(h, w2_ref[...], preferred_element_type=jnp.float32)
    o_ref[...] = (out + b2_ref[...]).astype(o_ref.dtype)


def _round_up(a, b):
    return ((a + b - 1) // b) * b


def _vmem_bytes(tm, D, H, P, x_itemsize, w_itemsize, out_itemsize):
    return (2 * tm * D * x_itemsize            # x tile (double-buffered)
            + 2 * tm * P * out_itemsize        # out tile (double-buffered)
            + D * H * w_itemsize + H * 4       # W1 + b1 (single resident copy)
            + H * P * w_itemsize + P * 4       # W2 + b2 (single resident copy)
            + tm * H * 4                       # hidden intermediate (f32)
            + tm * P * 4)                      # f32 result before output cast


def par_head_forward(x, w1, b1, w2, b2, *, tm=512):
    """Fused Par_Head forward: relu(x @ w1 + b1) @ w2 + b2.

    x : (M, D); w1 : (D, 128); b1 : (128,)/(1,128); w2 : (128, P);
    b2 : (P,)/(1,P).  Returns (M, P) in x.dtype.

    Perf mode: pass x already in bfloat16 (ideally produced upstream / jitted
    together so the cast fuses) -> both matmuls run bf16 on the MXU with f32
    accumulation and x HBM read traffic is halved.
    """
    M, D = x.shape
    H = w1.shape[1]
    P = w2.shape[1]
    out_dtype = x.dtype

    bf16_stream = (x.dtype == jnp.bfloat16)
    w_dtype = jnp.bfloat16 if bf16_stream else jnp.float32
    w1 = w1.astype(w_dtype)
    w2 = w2.astype(w_dtype)
    b1 = b1.reshape(1, H).astype(jnp.float32)
    b2 = b2.reshape(1, P).astype(jnp.float32)

    x_itemsize = jnp.dtype(x.dtype).itemsize
    w_itemsize = jnp.dtype(w_dtype).itemsize
    out_itemsize = jnp.dtype(out_dtype).itemsize

    # ---- M tiling -----------------------------------------------------------
    # bf16 packs two rows per sublane -> align rows to 16 there, 8 for f32.
    row_align = 16 if bf16_stream else 8
    if M <= tm:
        if M > tm // 2:
            # Mid-size batch: keep >=2 grid steps so both v7x TensorCores get
            # work under dimension_semantics=("parallel",).
            tm_eff = _round_up(pl.cdiv(M, 2), row_align)
        else:
            tm_eff = _round_up(max(M, row_align), row_align)
    else:
        tm_eff = _round_up(tm, row_align)

    # ---- generation-aware VMEM budget ---------------------------------------
    try:
        vmem_phys = int(pltpu.get_tpu_info().vmem_capacity_bytes)
    except Exception:
        vmem_phys = 64 << 20           # conservative (v7x per-TensorCore VMEM)
    vmem_cap = int(0.7 * vmem_phys)    # leave room for compiler internal scratch

    vmem_needed = _vmem_bytes(tm_eff, D, H, P, x_itemsize, w_itemsize, out_itemsize)
    while vmem_needed > vmem_cap and tm_eff > 4 * row_align:
        tm_eff = max(_round_up(tm_eff // 2, row_align), 4 * row_align)
        vmem_needed = _vmem_bytes(tm_eff, D, H, P, x_itemsize, w_itemsize, out_itemsize)

    grid = (pl.cdiv(M, tm_eff),)

    compiler_kwargs = dict(dimension_semantics=("parallel",))
    if vmem_needed > (16 << 20):       # above the smallest default scoped limit
        compiler_kwargs["vmem_limit_bytes"] = int(
            min(vmem_cap, max(vmem_needed + vmem_needed // 2, 16 << 20)))

    cost = pl.CostEstimate(
        flops=2 * M * (D * H + H * P),
        transcendentals=0,
        bytes_accessed=(M * D * x_itemsize + M * P * out_itemsize
                        + D * H * w_itemsize + H * 4
                        + H * P * w_itemsize + P * 4),
    )

    # Resident (single-buffered, loaded once) whole-array VMEM operands.
    resident = pl.BlockSpec(memory_space=pltpu.MemorySpace.VMEM)

    return pl.pallas_call(
        _par_head_kernel,
        out_shape=jax.ShapeDtypeStruct((M, P), out_dtype),
        grid_spec=pltpu.PrefetchScalarGridSpec(
            num_scalar_prefetch=0,
            grid=grid,
            in_specs=[
                pl.BlockSpec((tm_eff, D), lambda i: (i, 0)),   # streamed x tile
                resident,                                       # W1
                resident,                                       # b1
                resident,                                       # W2
                resident,                                       # b2
            ],
            out_specs=pl.BlockSpec((tm_eff, P), lambda i: (i, 0)),
        ),
        compiler_params=pltpu.CompilerParams(**compiler_kwargs),
        cost_estimate=cost,
    )(x, w1, b1, w2, b2)


def init_par_head_params(key, par_head_dim, num_part, hidden=128):
    """Deterministic PyTorch-Linear-style init: U(-1/sqrt(fan_in), 1/sqrt(fan_in))."""
    k1, k2, k3, k4 = jax.random.split(key, 4)
    bound1 = 1.0 / (par_head_dim ** 0.5)
    bound2 = 1.0 / (hidden ** 0.5)
    # Stored as (in, out) so the kernel computes x @ W directly.
    w1 = jax.random.uniform(k1, (par_head_dim, hidden), jnp.float32, -bound1, bound1)
    b1 = jax.random.uniform(k2, (1, hidden), jnp.float32, -bound1, bound1)
    w2 = jax.random.uniform(k3, (hidden, num_part), jnp.float32, -bound2, bound2)
    b2 = jax.random.uniform(k4, (1, num_part), jnp.float32, -bound2, bound2)
    return w1, b1, w2, b2


if __name__ == "__main__":
    # Small shapes consistent with the module's forward:
    #   features: (batch, par_head_dim), num_part classes out.
    batch = 64
    par_head_dim = 32
    num_part = 8

    key = jax.random.PRNGKey(0)
    kx, kp = jax.random.split(key)
    x = jax.random.normal(kx, (batch, par_head_dim), jnp.float32)
    w1, b1, w2, b2 = init_par_head_params(kp, par_head_dim, num_part)

    # Pure-JAX reference (dropout is identity at inference).
    ref = jnp.maximum(x @ w1 + b1, 0.0) @ w2 + b2

    # 1) f32 path (single resident block, unpadded output).
    out = jax.block_until_ready(par_head_forward(x, w1, b1, w2, b2))
    assert out.shape == (batch, num_part)
    assert jnp.allclose(out, ref, atol=1e-5, rtol=1e-5), "f32 mismatch vs reference"

    # 2) bf16 streaming path: cast fused with the head under jit (producer-side
    #    cast pattern), both matmuls bf16 on the MXU with f32 accumulation.
    bf16_head = jax.jit(
        lambda xx: par_head_forward(xx.astype(jnp.bfloat16), w1, b1, w2, b2))
    out_bf = jax.block_until_ready(bf16_head(x))

    def _r(v):  # bf16 round-trip to mirror the kernel's bf16 operands
        return v.astype(jnp.bfloat16).astype(jnp.float32)

    h_ref = jnp.maximum(_r(x) @ _r(w1) + b1, 0.0)
    ref_bf = _r(h_ref) @ _r(w2) + b2
    assert out_bf.dtype == jnp.bfloat16
    assert jnp.allclose(out_bf.astype(jnp.float32), ref_bf,
                        atol=2e-2, rtol=2e-2), "bf16 mismatch"

    # 3) Non-divisible, multi-tile batch: boundary block is masked by Pallas,
    #    no wrapper-side pad of x and no output slice.
    big_M = 1000
    xb = jax.random.normal(kx, (big_M, par_head_dim), jnp.float32)
    out_big = jax.block_until_ready(par_head_forward(xb, w1, b1, w2, b2, tm=512))
    ref_big = jnp.maximum(xb @ w1 + b1, 0.0) @ w2 + b2
    assert out_big.shape == (big_M, num_part)
    assert jnp.allclose(out_big, ref_big, atol=1e-5, rtol=1e-5), "big-M mismatch"

    # 4) Mid-size batch: exercises the >=2-grid-step split (v7x megacore path).
    mid_M = 384
    xm = jax.random.normal(kx, (mid_M, par_head_dim), jnp.float32)
    out_mid = jax.block_until_ready(par_head_forward(xm, w1, b1, w2, b2, tm=512))
    ref_mid = jnp.maximum(xm @ w1 + b1, 0.0) @ w2 + b2
    assert out_mid.shape == (mid_M, num_part)
    assert jnp.allclose(out_mid, ref_mid, atol=1e-5, rtol=1e-5), "mid-M mismatch"

    print("KERNEL_OK")
</pallas_src>

<mosaic_0001>
module attributes {stable_mosaic.version = 11 : i64} {
  func.func @_par_head_kernel(%arg0: i32, %arg1: memref<64x32xf32, #tpu.memory_space<vmem>>, %arg2: memref<32x128xf32, #tpu.memory_space<vmem>>, %arg3: memref<1x128xf32, #tpu.memory_space<vmem>>, %arg4: memref<128x8xf32, #tpu.memory_space<vmem>>, %arg5: memref<1x8xf32, #tpu.memory_space<vmem>>, %arg6: memref<64x8xf32, #tpu.memory_space<vmem>>) attributes {dimension_semantics = [#tpu.dimension_semantics<parallel>], iteration_bounds = array<i64: 1>, scalar_prefetch = 0 : i64, scratch_operands = 0 : i64, tpu.core_type = #tpu.core_type<tc>, window_params = [{transform_indices = @transform_0, window_bounds = array<i64: 64, 32>}, {pipeline_mode = #tpu.pipeline_mode<synchronous>, transform_indices = @transform_1, window_bounds = array<i64: 32, 128>}, {pipeline_mode = #tpu.pipeline_mode<synchronous>, transform_indices = @transform_2, window_bounds = array<i64: 1, 128>}, {pipeline_mode = #tpu.pipeline_mode<synchronous>, transform_indices = @transform_3, window_bounds = array<i64: 128, 8>}, {pipeline_mode = #tpu.pipeline_mode<synchronous>, transform_indices = @transform_4, window_bounds = array<i64: 1, 8>}, {transform_indices = @transform_5, window_bounds = array<i64: 64, 8>}]} {
    %c0 = arith.constant 0 : index
    %c0_0 = arith.constant 0 : index
    %0 = vector.load %arg1[%c0, %c0_0] : memref<64x32xf32, #tpu.memory_space<vmem>>, vector<64x32xf32>
    %c0_1 = arith.constant 0 : index
    %c0_2 = arith.constant 0 : index
    %1 = vector.load %arg2[%c0_1, %c0_2] : memref<32x128xf32, #tpu.memory_space<vmem>>, vector<32x128xf32>
    %cst = arith.constant dense<0.000000e+00> : vector<64x128xf32>
    %2 = tpu.matmul %0, %1, %cst {dimension_numbers = #tpu.dot_dimension_numbers<[1], [0], [0], [1], [0, 0, 1, 1], [], []>} : vector<64x32xf32>, vector<32x128xf32>, vector<64x128xf32> -> vector<64x128xf32>
    %c0_3 = arith.constant 0 : index
    %c0_4 = arith.constant 0 : index
    %3 = vector.load %arg3[%c0_3, %c0_4] : memref<1x128xf32, #tpu.memory_space<vmem>>, vector<1x128xf32>
    %4 = vector.broadcast %3 : vector<1x128xf32> to vector<64x128xf32>
    %5 = arith.addf %2, %4 : vector<64x128xf32>
    %cst_5 = arith.constant 0.000000e+00 : f32
    %6 = vector.broadcast %cst_5 : f32 to vector<64x128xf32>
    %7 = arith.maximumf %5, %6 : vector<64x128xf32>
    %c0_6 = arith.constant 0 : index
    %c0_7 = arith.constant 0 : index
    %8 = vector.load %arg4[%c0_6, %c0_7] : memref<128x8xf32, #tpu.memory_space<vmem>>, vector<128x8xf32>
    %cst_8 = arith.constant dense<0.000000e+00> : vector<64x8xf32>
    %9 = tpu.matmul %7, %8, %cst_8 {dimension_numbers = #tpu.dot_dimension_numbers<[1], [0], [0], [1], [0, 0, 1, 1], [], []>} : vector<64x128xf32>, vector<128x8xf32>, vector<64x8xf32> -> vector<64x8xf32>
    %c0_9 = arith.constant 0 : index
    %c0_10 = arith.constant 0 : index
    %10 = vector.load %arg5[%c0_9, %c0_10] : memref<1x8xf32, #tpu.memory_space<vmem>>, vector<1x8xf32>
    %11 = vector.broadcast %10 : vector<1x8xf32> to vector<64x8xf32>
    %12 = arith.addf %9, %11 : vector<64x8xf32>
    %c0_11 = arith.constant 0 : index
    %c0_12 = arith.constant 0 : index
    %13 = vector.load %arg6[%c0_11, %c0_12] : memref<64x8xf32, #tpu.memory_space<vmem>>, vector<64x8xf32>
    tpu.vector_store %arg6[%c0_11, %c0_12], %12 {strides = array<i32>} : memref<64x8xf32, #tpu.memory_space<vmem>>, vector<64x8xf32>,
    return
  }
  func.func @transform_0(%arg0: i32) -> (i32, i32) {
    %c0_i32 = arith.constant 0 : i32
    %c0_i32_0 = arith.constant 0 : i32
    return %arg0, %c0_i32 : i32, i32
  }
  func.func @transform_1(%arg0: i32) -> (i32, i32) {
    %c0_i32 = arith.constant 0 : i32
    %c0_i32_0 = arith.constant 0 : i32
    %c0_i32_1 = arith.constant 0 : i32
    return %c0_i32, %c0_i32_0 : i32, i32
  }
  func.func @transform_2(%arg0: i32) -> (i32, i32) {
    %c0_i32 = arith.constant 0 : i32
    %c0_i32_0 = arith.constant 0 : i32
    %c0_i32_1 = arith.constant 0 : i32
    return %c0_i32, %c0_i32_0 : i32, i32
  }
  func.func @transform_3(%arg0: i32) -> (i32, i32) {
    %c0_i32 = arith.constant 0 : i32
    %c0_i32_0 = arith.constant 0 : i32
    %c0_i32_1 = arith.constant 0 : i32
    return %c0_i32, %c0_i32_0 : i32, i32
  }
  func.func @transform_4(%arg0: i32) -> (i32, i32) {
    %c0_i32 = arith.constant 0 : i32
    %c0_i32_0 = arith.constant 0 : i32
    %c0_i32_1 = arith.constant 0 : i32
    return %c0_i32, %c0_i32_0 : i32, i32
  }
  func.func @transform_5(%arg0: i32) -> (i32, i32) {
    %c0_i32 = arith.constant 0 : i32
    %c0_i32_0 = arith.constant 0 : i32
    return %arg0, %c0_i32 : i32, i32
  }
}

</mosaic_0001>

<llo_original>
// kernel: tpu_custom_call.1
$region0: #{tpu_custom_call.1}
  #allocation0 [shape = 'u32[]', space=smem, size = 0x4, offset = 0x4, fixed_abs, tag = 'smem constant byte address 0x4 - core index']
  #allocation1 [shape = 'u32[72,128]{1,0:T(1,128)}', space=vmem, size = 0x9000, scoped, tag = 'internal scratch']
  %s0 = inlined_call_operand.vmem [shape: f32[64,32], index: 0, kind: input, shape index: {}]
  %s1 = inlined_call_operand.vmem [shape: f32[32,128], index: 1, kind: input, shape index: {}]
  %s2 = inlined_call_operand.vmem [shape: f32[1,128], index: 2, kind: input, shape index: {}]
  %s3 = inlined_call_operand.vmem [shape: f32[128,8], index: 3, kind: input, shape index: {}]
  %s4 = inlined_call_operand.vmem [shape: f32[1,8], index: 4, kind: input, shape index: {}]
  %s5 = inlined_call_operand.vmem [shape: f32[64,8], index: 5, kind: output, shape index: {}]
  %s6 = sld [smem:[#allocation0]]
  $region30: #{tpu_custom_call.1} parent=0
    _
  %s8 = ssub.s32 1, %s6
  %s9 = scalar_select 0, %s8, %s6
  // Predicated region
  $region2: #{tpu_custom_call.1} parent=0 // pred_check
    _
  $region3: #{tpu_custom_call.1} parent=0 // pred_check_branch
    %11 = sbr.rel (0) target = $region5
  $region4: #{tpu_custom_call.1} parent=0 // pred_region
    _
  $region5: #{tpu_custom_call.1} parent=0 // pred_fallthru
    _
  // Predicated region
  $region6: #{tpu_custom_call.1} parent=0 // pred_check
    _
  $region7: #{tpu_custom_call.1} parent=0 // pred_check_branch
    %13 = sbr.rel (0) target = $region9
  $region8: #{tpu_custom_call.1} parent=0 // pred_region
    _
  $region9: #{tpu_custom_call.1} parent=0 // pred_fallthru
    _
  // Predicated region
  $region10: #{tpu_custom_call.1} parent=0 // pred_check
    _
  $region11: #{tpu_custom_call.1} parent=0 // pred_check_branch
    %15 = sbr.rel (0) target = $region13
  $region12: #{tpu_custom_call.1} parent=0 // pred_region
    _
  $region13: #{tpu_custom_call.1} parent=0 // pred_fallthru
    _
  // Predicated region
  $region14: #{tpu_custom_call.1} parent=0 // pred_check
    _
  $region15: #{tpu_custom_call.1} parent=0 // pred_check_branch
    %17 = sbr.rel (0) target = $region17
  $region16: #{tpu_custom_call.1} parent=0 // pred_region
    _
  $region17: #{tpu_custom_call.1} parent=0 // pred_fallthru
    _
  // Predicated region
  $region18: #{tpu_custom_call.1} parent=0 // pred_check
    _
  $region19: #{tpu_custom_call.1} parent=0 // pred_check_branch
    %19 = sbr.rel (0) target = $region21
  $region20: #{tpu_custom_call.1} parent=0 // pred_region
    _
  $region21: #{tpu_custom_call.1} parent=0 // pred_fallthru
    _
  %v20 = vld [vmem:[%s0] sm:$0xff]
  %v21 = vld [vmem:[%s0 + $0x8] sm:$0xff]
  %v22 = vld [vmem:[%s0 + $0x10] sm:$0xff]
  %v23 = vld [vmem:[%s0 + $0x18] sm:$0xff]
  %v24 = vld [vmem:[%s0 + $0x20] sm:$0xff]
  %v25 = vld [vmem:[%s0 + $0x28] sm:$0xff]
  %v26 = vld [vmem:[%s0 + $0x30] sm:$0xff]
  %v27 = vld [vmem:[%s0 + $0x38] sm:$0xff]
  %v28 = vld [vmem:[%s1] sm:$0xff]
  %v29 = vld [vmem:[%s1 + $0x8] sm:$0xff]
  %v30 = vld [vmem:[%s1 + $0x10] sm:$0xff]
  %v31 = vld [vmem:[%s1 + $0x18] sm:$0xff]
  %v32 = vld [vmem:[%s2] sm:$0x1]
  %v34 = vperm.slane %v32, 0
  %vm36 = vcmask 261120
  %v38 = vsel %vm36, %v20, 0
  %v41 = vsel %vm36, %v21, 0
  %v44 = vsel %vm36, %v22, 0
  %v47 = vsel %vm36, %v23, 0
  %v50 = vsel %vm36, %v24, 0
  %v53 = vsel %vm36, %v25, 0
  %v56 = vsel %vm36, %v26, 0
  %v59 = vsel %vm36, %v27, 0
  %61 = vmatpush.msra.mxu0 0.0
  %62 = vmatpush.msra.mxu0 0.0
  %63 = vmatpush.msra.mxu0 0.0
  %64 = vmatpush.msra.mxu0 0.0
  %65 = vmatpush.msra.mxu0 0.0
  %66 = vmatpush.msra.mxu0 0.0
  %67 = vmatpush.msra.mxu0 0.0
  %68 = vmatpush.msra.mxu0 0.0
  %69 = vmatpush.msra.mxu0 0.0
  %70 = vmatpush.msra.mxu0 0.0
  %71 = vmatpush.msra.mxu0 0.0
  %72 = vmatpush.msra.mxu0 0.0
  %73 = vmatpush.msra.mxu0 %v31
  %74 = vmatpush.msra.mxu0 %v30
  %75 = vmatpush.msra.mxu0 %v29
  %76 = vmatpush.msra.mxu0 %v28
  %77 = vmatmul.f32.gmra.mxu0 %v38
  %v78 = vpop.f32.mrf.mxu0
  %v79 = vadd.f32 %v34, %v78
  %80 = vmatmul.f32.gmra.mxu0 %v41
  %v81 = vpop.f32.mrf.mxu0
  %v82 = vadd.f32 %v34, %v81
  %83 = vmatmul.f32.gmra.mxu0 %v44
  %v84 = vpop.f32.mrf.mxu0
  %v85 = vadd.f32 %v34, %v84
  %86 = vmatmul.f32.gmra.mxu0 %v47
  %v87 = vpop.f32.mrf.mxu0
  %v88 = vadd.f32 %v34, %v87
  %89 = vmatmul.f32.gmra.mxu0 %v50
  %v90 = vpop.f32.mrf.mxu0
  %v91 = vadd.f32 %v34, %v90
  %92 = vmatmul.f32.gmra.mxu0 %v53
  %v93 = vpop.f32.mrf.mxu0
  %v94 = vadd.f32 %v34, %v93
  %95 = vmatmul.f32.gmra.mxu0 %v56
  %v96 = vpop.f32.mrf.mxu0
  %v97 = vadd.f32 %v34, %v96
  %98 = vmatmul.f32.gmra.mxu0 %v59
  %v99 = vpop.f32.mrf.mxu0
  %v100 = vadd.f32 %v34, %v99
  %101 = vdwg.mxu0
  %v102 = vmax.f32 %v79, 0.0
  %v103 = vmax.f32 %v82, 0.0
  %v104 = vmax.f32 %v85, 0.0
  %v105 = vmax.f32 %v88, 0.0
  %v106 = vmax.f32 %v91, 0.0
  %v107 = vmax.f32 %v94, 0.0
  %v108 = vmax.f32 %v97, 0.0
  %v109 = vmax.f32 %v100, 0.0
  %v110 = vld [vmem:[%s3] sm:$0xff]
  %v111 = vld [vmem:[%s3 + $0x8] sm:$0xff]
  %v112 = vld [vmem:[%s3 + $0x10] sm:$0xff]
  %v113 = vld [vmem:[%s3 + $0x18] sm:$0xff]
  %v114 = vld [vmem:[%s3 + $0x20] sm:$0xff]
  %v115 = vld [vmem:[%s3 + $0x28] sm:$0xff]
  %v116 = vld [vmem:[%s3 + $0x30] sm:$0xff]
  %v117 = vld [vmem:[%s3 + $0x38] sm:$0xff]
  %v118 = vld [vmem:[%s3 + $0x40] sm:$0xff]
  %v119 = vld [vmem:[%s3 + $0x48] sm:$0xff]
  %v120 = vld [vmem:[%s3 + $0x50] sm:$0xff]
  %v121 = vld [vmem:[%s3 + $0x58] sm:$0xff]
  %v122 = vld [vmem:[%s3 + $0x60] sm:$0xff]
  %v123 = vld [vmem:[%s3 + $0x68] sm:$0xff]
  %v124 = vld [vmem:[%s3 + $0x70] sm:$0xff]
  %v125 = vld [vmem:[%s3 + $0x78] sm:$0xff]
  %v126 = vld [vmem:[%s4] sm:$0x1]
  %v128 = vperm.slane %v126, 0
  %130 = vmatpush.msra.mxu0 %v125
  %131 = vmatpush.msra.mxu0 %v124
  %132 = vmatpush.msra.mxu0 %v123
  %133 = vmatpush.msra.mxu0 %v122
  %134 = vmatpush.msra.mxu0 %v121
  %135 = vmatpush.msra.mxu0 %v120
  %136 = vmatpush.msra.mxu0 %v119
  %137 = vmatpush.msra.mxu0 %v118
  %138 = vmatpush.msra.mxu0 %v117
  %139 = vmatpush.msra.mxu0 %v116
  %140 = vmatpush.msra.mxu0 %v115
  %141 = vmatpush.msra.mxu0 %v114
  %142 = vmatpush.msra.mxu0 %v113
  %143 = vmatpush.msra.mxu0 %v112
  %144 = vmatpush.msra.mxu0 %v111
  %145 = vmatpush.msra.mxu0 %v110
  %146 = vmatmul.f32.gmra.mxu0 %v102
  %v147 = vpop.f32.mrf.mxu0
  %v148 = vadd.f32 %v128, %v147
  %149 = vmatmul.f32.gmra.mxu0 %v103
  %v150 = vpop.f32.mrf.mxu0
  %v151 = vadd.f32 %v128, %v150
  %152 = vmatmul.f32.gmra.mxu0 %v104
  %v153 = vpop.f32.mrf.mxu0
  %v154 = vadd.f32 %v128, %v153
  %155 = vmatmul.f32.gmra.mxu0 %v105
  %v156 = vpop.f32.mrf.mxu0
  %v157 = vadd.f32 %v128, %v156
  %158 = vmatmul.f32.gmra.mxu0 %v106
  %v159 = vpop.f32.mrf.mxu0
  %v160 = vadd.f32 %v128, %v159
  %161 = vmatmul.f32.gmra.mxu0 %v107
  %v162 = vpop.f32.mrf.mxu0
  %v163 = vadd.f32 %v128, %v162
  %164 = vmatmul.f32.gmra.mxu0 %v108
  %v165 = vpop.f32.mrf.mxu0
  %v166 = vadd.f32 %v128, %v165
  %167 = vmatmul.f32.gmra.mxu0 %v109
  %v168 = vpop.f32.mrf.mxu0
  %v169 = vadd.f32 %v128, %v168
  %170 = vdwg.mxu0
  %vm171 = vcmask 64512
  %172 = vst.msk [vmem:[%s5] sm:$0xff] %vm171, %v148
  %173 = vst.msk [vmem:[%s5 + $0x8] sm:$0xff] %vm171, %v151
  %174 = vst.msk [vmem:[%s5 + $0x10] sm:$0xff] %vm171, %v154
  %175 = vst.msk [vmem:[%s5 + $0x18] sm:$0xff] %vm171, %v157
  %176 = vst.msk [vmem:[%s5 + $0x20] sm:$0xff] %vm171, %v160
  %177 = vst.msk [vmem:[%s5 + $0x28] sm:$0xff] %vm171, %v163
  %178 = vst.msk [vmem:[%s5 + $0x30] sm:$0xff] %vm171, %v166
  %179 = vst.msk [vmem:[%s5 + $0x38] sm:$0xff] %vm171, %v169
  // Predicated region
  $region22: #{tpu_custom_call.1} parent=0 // pred_check
    _
  $region23: #{tpu_custom_call.1} parent=0 // pred_check_branch
    %181 = sbr.rel (0) target = $region25
  $region24: #{tpu_custom_call.1} parent=0 // pred_region
    _
  $region25: #{tpu_custom_call.1} parent=0 // pred_fallthru
    _
  // Predicated region
  $region26: #{tpu_custom_call.1} parent=0 // pred_check
    _
  $region27: #{tpu_custom_call.1} parent=0 // pred_check_branch
    %183 = sbr.rel (0) target = $region29
  $region28: #{tpu_custom_call.1} parent=0 // pred_region
    _
  $region29: #{tpu_custom_call.1} parent=0 // pred_fallthru
    _

</llo_original>
